<compile_context>
chip_gen: v7x
topology: tpu7x:2x2x1
jax: 0.10.0
libtpu: 0.0.40
codegen_flags: <defaults>
</compile_context>

<pallas_src>
import jax
import jax.numpy as jnp
import numpy as np
from jax.experimental import pallas as pl
from jax.experimental.pallas import tpu as pltpu


def _round_up(x, m):
    return (x + m - 1) // m * m


# ----------------------------------------------------------------------------
# Kernel
# ----------------------------------------------------------------------------
def hgrn_bit_mlp_kernel(x_ref, wg_ref, wy_ref, wd_ref, s1_ref, s2_ref, o_ref):
    inv127 = 1.0 / 127.0
    x = x_ref[...].astype(jnp.float32)                                   # (TB, H)

    # BitLinear #1: per-row absmax int8 activation quant (f32 math; the
    # quantized values are small integers, exactly representable in bf16).
    xmax = jnp.maximum(jnp.max(jnp.abs(x), axis=-1, keepdims=True), 1e-5)
    xq = jnp.clip(jnp.round(x * (127.0 / xmax)), -128.0, 127.0).astype(jnp.bfloat16)
    deq1 = (xmax * inv127) * s1_ref[0]                                   # (TB, 1)

    # gate_proj, pre-split into gate / y halves (no concat / chunk in-kernel).
    gate = jnp.dot(xq, wg_ref[...], preferred_element_type=jnp.float32) * deq1
    y = jnp.dot(xq, wy_ref[...], preferred_element_type=jnp.float32) * deq1

    # swish(gate) * y
    h = (gate * jax.nn.sigmoid(gate)) * y                                # (TB, I)

    # BitLinear #2: re-quantize the intermediate activation per row.
    hmax = jnp.maximum(jnp.max(jnp.abs(h), axis=-1, keepdims=True), 1e-5)
    hq = jnp.clip(jnp.round(h * (127.0 / hmax)), -128.0, 127.0).astype(jnp.bfloat16)
    deq2 = (hmax * inv127) * s2_ref[0]                                   # (TB, 1)

    out = jnp.dot(hq, wd_ref[...], preferred_element_type=jnp.float32) * deq2
    o_ref[...] = out.astype(o_ref.dtype)


# ----------------------------------------------------------------------------
# Parameter prep (done once, NOT per forward call)
# ----------------------------------------------------------------------------
def prepare_hgrn_bit_mlp_params(w_gate_proj, w_down_proj):
    """Quantize + pre-transpose + pre-split the BitLinear weights once.

    w_gate_proj: (2*I, H) torch nn.Linear layout; w_down_proj: (H, I).
    Returns (wg, wy, wd, s1, s2): bf16 ternary weights in (in, out) layout and
    f32 per-tensor dequant scales, shape (1,) each.
    """
    two_i, _ = w_gate_proj.shape
    inter = two_i // 2

    def quant(w):
        w = w.astype(jnp.float32)
        scale = 1.0 / jnp.maximum(jnp.mean(jnp.abs(w)), 1e-5)
        wq = jnp.clip(jnp.round(w * scale), -1.0, 1.0)
        return wq, (1.0 / scale).reshape(1).astype(jnp.float32)

    w1q, s1 = quant(w_gate_proj)          # per-tensor scale over the FULL gate_proj weight
    w2q, s2 = quant(w_down_proj)
    wg = w1q[:inter].T.astype(jnp.bfloat16)      # (H, I)   gate half
    wy = w1q[inter:].T.astype(jnp.bfloat16)      # (H, I)   y half
    wd = w2q.T.astype(jnp.bfloat16)              # (I, H)
    return wg, wy, wd, s1, s2


# ----------------------------------------------------------------------------
# Wrapper
# ----------------------------------------------------------------------------
def hgrn_bit_mlp(x, prepared, block_rows=128):
    """x: (..., hidden). Returns same shape/dtype."""
    wg, wy, wd, s1, s2 = prepared
    hidden = x.shape[-1]
    inter = wg.shape[1]
    orig_shape = x.shape

    n = int(np.prod(orig_shape[:-1]))
    x2 = x.reshape(n, hidden)

    tb = min(block_rows, _round_up(n, 8))
    n_pad = _round_up(n, tb)
    if n_pad != n:
        x2 = jnp.pad(x2, ((0, n_pad - n), (0, 0)))

    smem = pl.BlockSpec(memory_space=pltpu.MemorySpace.SMEM)
    out = pl.pallas_call(
        hgrn_bit_mlp_kernel,
        out_shape=jax.ShapeDtypeStruct((n_pad, hidden), x.dtype),
        grid=(n_pad // tb,),
        in_specs=[
            pl.BlockSpec((tb, hidden), lambda i: (i, 0)),      # x row block
            pl.BlockSpec((hidden, inter), lambda i: (0, 0)),   # W1 gate half (resident)
            pl.BlockSpec((hidden, inter), lambda i: (0, 0)),   # W1 y half    (resident)
            pl.BlockSpec((inter, hidden), lambda i: (0, 0)),   # W2           (resident)
            smem,                                              # 1/w1_scale
            smem,                                              # 1/w2_scale
        ],
        out_specs=pl.BlockSpec((tb, hidden), lambda i: (i, 0)),
        compiler_params=pltpu.CompilerParams(dimension_semantics=("parallel",)),
    )(x2, wg, wy, wd, s1, s2)
    return out[:n].reshape(orig_shape)


# ----------------------------------------------------------------------------
# Pure-JAX reference mirroring the PyTorch module
# ----------------------------------------------------------------------------
def _activation_quant_ref(x):
    scale = 127.0 / jnp.clip(jnp.max(jnp.abs(x), axis=-1, keepdims=True), 1e-5, None)
    return jnp.clip(jnp.round(x * scale), -128, 127) / scale


def _weight_quant_ref(w):
    scale = 1.0 / jnp.clip(jnp.mean(jnp.abs(w)), 1e-5, None)
    return jnp.clip(jnp.round(w * scale), -1, 1) / scale


def reference(x, w_gate_proj, w_down_proj):
    hp = jax.lax.Precision.HIGHEST
    xq = _activation_quant_ref(x)
    w1q = _weight_quant_ref(w_gate_proj)
    y = jnp.dot(xq, w1q.T, precision=hp)
    gate, y = jnp.split(y, 2, axis=-1)
    h = gate * jax.nn.sigmoid(gate) * y           # swish(gate) * y
    hq = _activation_quant_ref(h)
    w2q = _weight_quant_ref(w_down_proj)
    return jnp.dot(hq, w2q.T, precision=hp)


if __name__ == "__main__":
    # Module-default sizing at small scale: hidden_size=64, hidden_ratio=4
    hidden_size = 64
    hidden_ratio = 4
    intermediate_size = int(hidden_size * hidden_ratio * 2 / 3)
    intermediate_size = 256 * ((intermediate_size + 256 - 1) // 256)     # -> 256
    batch, seq = 2, 8

    key = jax.random.PRNGKey(0)
    kx, kw1, kw2 = jax.random.split(key, 3)
    x = jax.random.normal(kx, (batch, seq, hidden_size), dtype=jnp.float32)
    # nn.Linear weights in torch (out, in) layout, bias=False.
    w_gate_proj = jax.random.normal(kw1, (2 * intermediate_size, hidden_size), jnp.float32) * 0.02
    w_down_proj = jax.random.normal(kw2, (hidden_size, intermediate_size), jnp.float32) * 0.02

    prepared = prepare_hgrn_bit_mlp_params(w_gate_proj, w_down_proj)

    out = jax.block_until_ready(hgrn_bit_mlp(x, prepared))
    ref = jax.block_until_ready(reference(x, w_gate_proj, w_down_proj))

    np.testing.assert_allclose(np.asarray(out), np.asarray(ref), rtol=5e-3, atol=2e-5)
    assert out.shape == x.shape and out.dtype == x.dtype
    print("KERNEL_OK")
</pallas_src>

<mosaic_0001>
module attributes {stable_mosaic.version = 11 : i64} {
  func.func @hgrn_bit_mlp_kernel(%arg0: i32, %arg1: memref<16x64xf32, #tpu.memory_space<vmem>>, %arg2: memref<64x256xbf16, #tpu.memory_space<vmem>>, %arg3: memref<64x256xbf16, #tpu.memory_space<vmem>>, %arg4: memref<256x64xbf16, #tpu.memory_space<vmem>>, %arg5: memref<1xf32, #tpu.memory_space<smem>>, %arg6: memref<1xf32, #tpu.memory_space<smem>>, %arg7: memref<16x64xf32, #tpu.memory_space<vmem>>) attributes {dimension_semantics = [#tpu.dimension_semantics<parallel>], iteration_bounds = array<i64: 1>, scalar_prefetch = 0 : i64, scratch_operands = 0 : i64, tpu.core_type = #tpu.core_type<tc>, window_params = [{transform_indices = @transform_0, window_bounds = array<i64: 16, 64>}, {pipeline_mode = #tpu.pipeline_mode<synchronous>, transform_indices = @transform_1, window_bounds = array<i64: 64, 256>}, {pipeline_mode = #tpu.pipeline_mode<synchronous>, transform_indices = @transform_2, window_bounds = array<i64: 64, 256>}, {pipeline_mode = #tpu.pipeline_mode<synchronous>, transform_indices = @transform_3, window_bounds = array<i64: 256, 64>}, {transform_indices = @transform_4, window_bounds = array<i64: 1>}, {transform_indices = @transform_5, window_bounds = array<i64: 1>}, {transform_indices = @transform_6, window_bounds = array<i64: 16, 64>}]} {
    %c0 = arith.constant 0 : index
    %c0_0 = arith.constant 0 : index
    %0 = vector.load %arg1[%c0, %c0_0] : memref<16x64xf32, #tpu.memory_space<vmem>>, vector<16x64xf32>
    %1 = math.absf %0 : vector<16x64xf32>
    %cst = arith.constant dense<0xFF800000> : vector<16xf32>
    %2 = vector.multi_reduction <maximumf>, %1, %cst [1] : vector<16x64xf32> to vector<16xf32>
    %3 = vector.shape_cast %2 : vector<16xf32> to vector<16x1xf32>
    %cst_1 = arith.constant 9.99999974E-6 : f32
    %4 = vector.broadcast %cst_1 : f32 to vector<16x1xf32>
    %5 = arith.maximumf %3, %4 : vector<16x1xf32>
    %cst_2 = arith.constant 1.270000e+02 : f32
    %6 = vector.broadcast %cst_2 : f32 to vector<16x1xf32>
    %7 = arith.divf %6, %5 : vector<16x1xf32>
    %8 = vector.broadcast %7 : vector<16x1xf32> to vector<16x64xf32>
    %9 = arith.mulf %0, %8 : vector<16x64xf32>
    %10 = math.roundeven %9 : vector<16x64xf32>
    %cst_3 = arith.constant -1.280000e+02 : f32
    %cst_4 = arith.constant 1.270000e+02 : f32
    %11 = vector.broadcast %cst_3 : f32 to vector<16x64xf32>
    %12 = arith.maximumf %11, %10 : vector<16x64xf32>
    %13 = vector.broadcast %cst_4 : f32 to vector<16x64xf32>
    %14 = arith.minimumf %13, %12 : vector<16x64xf32>
    %15 = arith.truncf %14 : vector<16x64xf32> to vector<16x64xbf16>
    %cst_5 = arith.constant 0.00787401571 : f32
    %16 = vector.broadcast %cst_5 : f32 to vector<16x1xf32>
    %17 = arith.mulf %5, %16 : vector<16x1xf32>
    %c0_6 = arith.constant 0 : index
    %18 = memref.load %arg5[%c0_6] : memref<1xf32, #tpu.memory_space<smem>>
    %19 = vector.broadcast %18 : f32 to vector<16x1xf32>
    %20 = arith.mulf %17, %19 : vector<16x1xf32>
    %c0_7 = arith.constant 0 : index
    %c0_8 = arith.constant 0 : index
    %21 = vector.load %arg2[%c0_7, %c0_8] : memref<64x256xbf16, #tpu.memory_space<vmem>>, vector<64x256xbf16>
    %cst_9 = arith.constant dense<0.000000e+00> : vector<16x256xf32>
    %22 = tpu.matmul %15, %21, %cst_9 {dimension_numbers = #tpu.dot_dimension_numbers<[1], [0], [0], [1], [0, 0, 1, 1], [], []>} : vector<16x64xbf16>, vector<64x256xbf16>, vector<16x256xf32> -> vector<16x256xf32>
    %23 = vector.broadcast %20 : vector<16x1xf32> to vector<16x256xf32>
    %24 = arith.mulf %22, %23 : vector<16x256xf32>
    %c0_10 = arith.constant 0 : index
    %c0_11 = arith.constant 0 : index
    %25 = vector.load %arg3[%c0_10, %c0_11] : memref<64x256xbf16, #tpu.memory_space<vmem>>, vector<64x256xbf16>
    %cst_12 = arith.constant dense<0.000000e+00> : vector<16x256xf32>
    %26 = tpu.matmul %15, %25, %cst_12 {dimension_numbers = #tpu.dot_dimension_numbers<[1], [0], [0], [1], [0, 0, 1, 1], [], []>} : vector<16x64xbf16>, vector<64x256xbf16>, vector<16x256xf32> -> vector<16x256xf32>
    %27 = vector.broadcast %20 : vector<16x1xf32> to vector<16x256xf32>
    %28 = arith.mulf %26, %27 : vector<16x256xf32>
    %29 = arith.negf %24 : vector<16x256xf32>
    %30 = math.exp %29 : vector<16x256xf32>
    %cst_13 = arith.constant 1.000000e+00 : f32
    %31 = vector.broadcast %cst_13 : f32 to vector<16x256xf32>
    %32 = arith.addf %31, %30 : vector<16x256xf32>
    %33 = arith.divf %31, %32 : vector<16x256xf32>
    %34 = arith.mulf %24, %33 : vector<16x256xf32>
    %35 = arith.mulf %34, %28 : vector<16x256xf32>
    %36 = math.absf %35 : vector<16x256xf32>
    %cst_14 = arith.constant dense<0xFF800000> : vector<16xf32>
    %37 = vector.multi_reduction <maximumf>, %36, %cst_14 [1] : vector<16x256xf32> to vector<16xf32>
    %38 = vector.shape_cast %37 : vector<16xf32> to vector<16x1xf32>
    %cst_15 = arith.constant 9.99999974E-6 : f32
    %39 = vector.broadcast %cst_15 : f32 to vector<16x1xf32>
    %40 = arith.maximumf %38, %39 : vector<16x1xf32>
    %cst_16 = arith.constant 1.270000e+02 : f32
    %41 = vector.broadcast %cst_16 : f32 to vector<16x1xf32>
    %42 = arith.divf %41, %40 : vector<16x1xf32>
    %43 = vector.broadcast %42 : vector<16x1xf32> to vector<16x256xf32>
    %44 = arith.mulf %35, %43 : vector<16x256xf32>
    %45 = math.roundeven %44 : vector<16x256xf32>
    %cst_17 = arith.constant -1.280000e+02 : f32
    %cst_18 = arith.constant 1.270000e+02 : f32
    %46 = vector.broadcast %cst_17 : f32 to vector<16x256xf32>
    %47 = arith.maximumf %46, %45 : vector<16x256xf32>
    %48 = vector.broadcast %cst_18 : f32 to vector<16x256xf32>
    %49 = arith.minimumf %48, %47 : vector<16x256xf32>
    %50 = arith.truncf %49 : vector<16x256xf32> to vector<16x256xbf16>
    %cst_19 = arith.constant 0.00787401571 : f32
    %51 = vector.broadcast %cst_19 : f32 to vector<16x1xf32>
    %52 = arith.mulf %40, %51 : vector<16x1xf32>
    %c0_20 = arith.constant 0 : index
    %53 = memref.load %arg6[%c0_20] : memref<1xf32, #tpu.memory_space<smem>>
    %54 = vector.broadcast %53 : f32 to vector<16x1xf32>
    %55 = arith.mulf %52, %54 : vector<16x1xf32>
    %c0_21 = arith.constant 0 : index
    %c0_22 = arith.constant 0 : index
    %56 = vector.load %arg4[%c0_21, %c0_22] : memref<256x64xbf16, #tpu.memory_space<vmem>>, vector<256x64xbf16>
    %cst_23 = arith.constant dense<0.000000e+00> : vector<16x64xf32>
    %57 = tpu.matmul %50, %56, %cst_23 {dimension_numbers = #tpu.dot_dimension_numbers<[1], [0], [0], [1], [0, 0, 1, 1], [], []>} : vector<16x256xbf16>, vector<256x64xbf16>, vector<16x64xf32> -> vector<16x64xf32>
    %58 = vector.broadcast %55 : vector<16x1xf32> to vector<16x64xf32>
    %59 = arith.mulf %57, %58 : vector<16x64xf32>
    %c0_24 = arith.constant 0 : index
    %c0_25 = arith.constant 0 : index
    %60 = vector.load %arg7[%c0_24, %c0_25] : memref<16x64xf32, #tpu.memory_space<vmem>>, vector<16x64xf32>
    tpu.vector_store %arg7[%c0_24, %c0_25], %59 {strides = array<i32>} : memref<16x64xf32, #tpu.memory_space<vmem>>, vector<16x64xf32>,
    return
  }
  func.func @transform_0(%arg0: i32) -> (i32, i32) {
    %c0_i32 = arith.constant 0 : i32
    %c0_i32_0 = arith.constant 0 : i32
    return %arg0, %c0_i32 : i32, i32
  }
  func.func @transform_1(%arg0: i32) -> (i32, i32) {
    %c0_i32 = arith.constant 0 : i32
    %c0_i32_0 = arith.constant 0 : i32
    %c0_i32_1 = arith.constant 0 : i32
    return %c0_i32, %c0_i32_0 : i32, i32
  }
  func.func @transform_2(%arg0: i32) -> (i32, i32) {
    %c0_i32 = arith.constant 0 : i32
    %c0_i32_0 = arith.constant 0 : i32
    %c0_i32_1 = arith.constant 0 : i32
    return %c0_i32, %c0_i32_0 : i32, i32
  }
  func.func @transform_3(%arg0: i32) -> (i32, i32) {
    %c0_i32 = arith.constant 0 : i32
    %c0_i32_0 = arith.constant 0 : i32
    %c0_i32_1 = arith.constant 0 : i32
    return %c0_i32, %c0_i32_0 : i32, i32
  }
  func.func @transform_4(%arg0: i32) -> i32 {
    %c0_i32 = arith.constant 0 : i32
    %c0_i32_0 = arith.constant 0 : i32
    return %c0_i32 : i32
  }
  func.func @transform_5(%arg0: i32) -> i32 {
    %c0_i32 = arith.constant 0 : i32
    %c0_i32_0 = arith.constant 0 : i32
    return %c0_i32 : i32
  }
  func.func @transform_6(%arg0: i32) -> (i32, i32) {
    %c0_i32 = arith.constant 0 : i32
    %c0_i32_0 = arith.constant 0 : i32
    return %arg0, %c0_i32 : i32, i32
  }
}

</mosaic_0001>

<llo_original>
// kernel: tpu_custom_call.1
$region0: #{tpu_custom_call.1}
  #allocation0 [shape = 'u32[]', space=smem, size = 0x4, offset = 0x4, fixed_abs, tag = 'smem constant byte address 0x4 - core index']
  #allocation1 [shape = 'u32[144,128]{1,0:T(1,128)}', space=vmem, size = 0x12000, scoped, tag = 'internal scratch']
  #allocation2 [shape = 'f32[1]{0:T(128)S(6)}', space=smem, size = 0x200, scoped, tag = 'scoped memory for tpu_custom_call.1']
  #allocation3 [shape = 'f32[1]{0:T(128)S(6)}', space=smem, size = 0x200, scoped, tag = 'scoped memory for tpu_custom_call.1']
  %s0 = inlined_call_operand.vmem [shape: f32[16,64], index: 0, kind: input, shape index: {}]
  %s1 = inlined_call_operand.vmem [shape: bf16[64,256], index: 1, kind: input, shape index: {}]
  %s2 = inlined_call_operand.vmem [shape: bf16[64,256], index: 2, kind: input, shape index: {}]
  %s3 = inlined_call_operand.vmem [shape: bf16[256,64], index: 3, kind: input, shape index: {}]
  %s4 = inlined_call_operand.<no memory space> [shape: f32[1], index: 4, kind: input, shape index: {}]
  %s5 = inlined_call_operand.<no memory space> [shape: f32[1], index: 5, kind: input, shape index: {}]
  %s6 = inlined_call_operand.hbm [shape: f32[16,64], index: 6, kind: output, shape index: {}]
  %s7 = sld [smem:[#allocation0]]
  $region34: #{tpu_custom_call.1} parent=0
    _
  %s9 = ssub.s32 1, %s7
  %s10 = scalar_select 0, %s9, %s7
  %11 = sst [smem:[#allocation2]] %s4
  %12 = sst [smem:[#allocation3]] %s5
  $region1: #{tpu_custom_call.1} parent=0
    #allocation4 [shape = 'u8[8192]{0}', space=vmem, size = 0x2000, scoped, tag = 'output window, operand 0, single buffered']
    #allocation5 [shape = 's32[1]{0}', space=sflag, size = 0x4, scoped, tag = 'scoped memory for tpu_custom_call.1']
    %13 = vsyncpa [#allocation5], 0
    // Predicated region
    $region2: #{tpu_custom_call.1} parent=1 // pred_check
      _
    $region3: #{tpu_custom_call.1} parent=1 // pred_check_branch
      %15 = sbr.rel (0) target = $region5
    $region4: #{tpu_custom_call.1} parent=1 // pred_region
      _
    $region5: #{tpu_custom_call.1} parent=1 // pred_fallthru
      _
    // Predicated region
    $region6: #{tpu_custom_call.1} parent=1 // pred_check
      _
    $region7: #{tpu_custom_call.1} parent=1 // pred_check_branch
      %17 = sbr.rel (0) target = $region9
    $region8: #{tpu_custom_call.1} parent=1 // pred_region
      _
    $region9: #{tpu_custom_call.1} parent=1 // pred_fallthru
      _
    // Predicated region
    $region10: #{tpu_custom_call.1} parent=1 // pred_check
      _
    $region11: #{tpu_custom_call.1} parent=1 // pred_check_branch
      %19 = sbr.rel (0) target = $region13
    $region12: #{tpu_custom_call.1} parent=1 // pred_region
      _
    $region13: #{tpu_custom_call.1} parent=1 // pred_fallthru
      _
    // Predicated region
    $region14: #{tpu_custom_call.1} parent=1 // pred_check
      _
    $region15: #{tpu_custom_call.1} parent=1 // pred_check_branch
      %21 = sbr.rel (0) target = $region17
    $region16: #{tpu_custom_call.1} parent=1 // pred_region
      _
    $region17: #{tpu_custom_call.1} parent=1 // pred_fallthru
      _
    // Predicated region
    $region18: #{tpu_custom_call.1} parent=1 // pred_check
      _
    $region19: #{tpu_custom_call.1} parent=1 // pred_check_branch
      %23 = sbr.rel (0) target = $region21
    $region20: #{tpu_custom_call.1} parent=1 // pred_region
      _
    $region21: #{tpu_custom_call.1} parent=1 // pred_fallthru
      _
    // Predicated region
    $region22: #{tpu_custom_call.1} parent=1 // pred_check
      _
    $region23: #{tpu_custom_call.1} parent=1 // pred_check_branch
      %25 = sbr.rel (0) target = $region25
    $region24: #{tpu_custom_call.1} parent=1 // pred_region
      _
    $region25: #{tpu_custom_call.1} parent=1 // pred_fallthru
      _
    %v27 = vld [vmem:[%s0] sm:$0xff]
    %v28 = vld [vmem:[%s0 + $0x8] sm:$0xff]
    %v29 = vand.u32 2147483647, %v27
    %v30 = vand.u32 2147483647, %v28
    %vm31 = vcmask 523264
    %v32 = vsel %vm31, %v29, -inf
    %33 = vmax.xlane.f32.xlu0 %v32
    %v34 = vpop.xlane.xlu0 %33
    %v35 = vsel %vm31, %v30, -inf
    %36 = vmax.xlane.f32.xlu0 %v35
    %v37 = vpop.xlane.xlu0 %36
    %v38 = vmax.f32 %v34, 1e-05
    %v39 = vmax.f32 %v37, 1e-05
    %v40 = vrcp.pop %v38
    %v41 = vmul.f32 127.0, %v40
    %v42 = vrcp.pop %v39
    %v43 = vmul.f32 127.0, %v42
    %v44 = vmul.f32 %v27, %v41
    %v45 = vmul.f32 %v28, %v43
    %v46 = vround.ne.pseudo %v44
    %v47 = vround.ne.pseudo %v45
    %v48 = vmax.f32 %v46, -128.0
    %v49 = vmax.f32 %v47, -128.0
    %v50 = vmin.f32 %v48, 127.0
    %v51 = vmin.f32 %v49, 127.0
    %v52 = vpack.c.bf16 %v51, %v50
    %v53 = vmul.f32 %v38, 0.007874016
    %v54 = vmul.f32 %v39, 0.007874016
    %s55 = sld [smem:[#allocation2]]
    %v56 = vstv %s55
    %v57 = vmul.f32 %v53, %v56
    %v58 = vmul.f32 %v54, %v56
    %v59 = vld [vmem:[%s1] sm:$0xff]
    %v60 = vld [vmem:[%s1 + $0x8] sm:$0xff]
    %v61 = vld [vmem:[%s1 + $0x10] sm:$0xff]
    %v62 = vld [vmem:[%s1 + $0x18] sm:$0xff]
    %v63 = vld [vmem:[%s1 + $0x20] sm:$0xff]
    %v64 = vld [vmem:[%s1 + $0x28] sm:$0xff]
    %v65 = vld [vmem:[%s1 + $0x30] sm:$0xff]
    %v66 = vld [vmem:[%s1 + $0x38] sm:$0xff]
    %v75 = vunpack.c.l.b16 %v59
    %v76 = vunpack.c.h.b16 %v59
    %v77 = vunpack.c.l.b16 %v60
    %v78 = vunpack.c.h.b16 %v60
    %v79 = vunpack.c.l.b16 %v61
    %v80 = vunpack.c.h.b16 %v61
    %v81 = vunpack.c.l.b16 %v62
    %v82 = vunpack.c.h.b16 %v62
    %v83 = vunpack.c.l.b16 %v63
    %v84 = vunpack.c.h.b16 %v63
    %v85 = vunpack.c.l.b16 %v64
    %v86 = vunpack.c.h.b16 %v64
    %v87 = vunpack.c.l.b16 %v65
    %v88 = vunpack.c.h.b16 %v65
    %v89 = vunpack.c.l.b16 %v66
    %v90 = vunpack.c.h.b16 %v66
    %v91 = vpack.c.b16 %v77, %v75
    %v92 = vpack.c.b16 %v78, %v76
    %v93 = vpack.c.b16 %v81, %v79
    %v94 = vpack.c.b16 %v82, %v80
    %v95 = vpack.c.b16 %v85, %v83
    %v96 = vpack.c.b16 %v86, %v84
    %v97 = vpack.c.b16 %v89, %v87
    %v98 = vpack.c.b16 %v90, %v88
    %v108 = vsel %vm31, %v52, 0
    %110 = vmatprep.subr.bf16.mxu0 %v92
    %111 = vmatpush1.bf16.msra.mxu0 %v91
    %112 = vmatprep.subr.bf16.mxu0 %v94
    %113 = vmatpush1.bf16.msra.mxu0 %v93
    %114 = vmatprep.subr.bf16.mxu0 %v96
    %115 = vmatpush1.bf16.msra.mxu0 %v95
    %116 = vmatprep.subr.bf16.mxu0 %v98
    %117 = vmatpush1.bf16.msra.mxu0 %v97
    %118 = vmatprep.subr.bf16.mxu0 0
    %119 = vmatpush1.bf16.msra.mxu0 0
    %120 = vmatprep.subr.bf16.mxu0 0
    %121 = vmatpush1.bf16.msra.mxu0 0
    %122 = vmatprep.subr.bf16.mxu0 0
    %123 = vmatpush1.bf16.msra.mxu0 0
    %124 = vmatprep.subr.bf16.mxu0 0
    %125 = vmatpush1.bf16.msra.mxu0 0
    %126 = vmatprep.subr.bf16.mxu0 0
    %127 = vmatpush1.bf16.msra.mxu0 0
    %128 = vmatprep.subr.bf16.mxu0 0
    %129 = vmatpush1.bf16.msra.mxu0 0
    %130 = vmatprep.subr.bf16.mxu0 0
    %131 = vmatpush1.bf16.msra.mxu0 0
    %132 = vmatprep.subr.bf16.mxu0 0
    %133 = vmatpush1.bf16.msra.mxu0 0
    %134 = vmatprep.subr.bf16.mxu0 0
    %135 = vmatpush1.bf16.msra.mxu0 0
    %136 = vmatprep.subr.bf16.mxu0 0
    %137 = vmatpush1.bf16.msra.mxu0 0
    %138 = vmatprep.subr.bf16.mxu0 0
    %139 = vmatpush1.bf16.msra.mxu0 0
    %140 = vmatprep.subr.bf16.mxu0 0
    %141 = vmatpush1.bf16.msra.mxu0 0
    %142 = vmatprep.mubr.bf16.mxu0 0
    %143 = vmatmul.mubr.bf16.gmra.mrb[0].mxu0 %v108
    %v144 = vpop.f32.mrb[0].mxu0
    %v145 = vadd.f32 0.0, %v144
    %v146 = vpop.f32.mrb[0].mxu0
    %v147 = vadd.f32 0.0, %v146
    %v148 = vpop.f32.mrb[0].mxu0
    %v149 = vadd.f32 0.0, %v148
    %v150 = vpop.f32.mrb[0].mxu0
    %v151 = vadd.f32 0.0, %v150
    %152 = vdwg.mxu0
    %v153 = vmul.f32 %v145, %v57
    %v154 = vmul.f32 %v147, %v57
    %v155 = vmul.f32 %v149, %v58
    %v156 = vmul.f32 %v151, %v58
    %v157 = vld [vmem:[%s2] sm:$0xff]
    %v158 = vld [vmem:[%s2 + $0x8] sm:$0xff]
    %v159 = vld [vmem:[%s2 + $0x10] sm:$0xff]
    %v160 = vld [vmem:[%s2 + $0x18] sm:$0xff]
    %v161 = vld [vmem:[%s2 + $0x20] sm:$0xff]
    %v162 = vld [vmem:[%s2 + $0x28] sm:$0xff]
    %v163 = vld [vmem:[%s2 + $0x30] sm:$0xff]
    %v164 = vld [vmem:[%s2 + $0x38] sm:$0xff]
    %v173 = vunpack.c.l.b16 %v157
    %v174 = vunpack.c.h.b16 %v157
    %v175 = vunpack.c.l.b16 %v158
    %v176 = vunpack.c.h.b16 %v158
    %v177 = vunpack.c.l.b16 %v159
    %v178 = vunpack.c.h.b16 %v159
    %v179 = vunpack.c.l.b16 %v160
    %v180 = vunpack.c.h.b16 %v160
    %v181 = vunpack.c.l.b16 %v161
    %v182 = vunpack.c.h.b16 %v161
    %v183 = vunpack.c.l.b16 %v162
    %v184 = vunpack.c.h.b16 %v162
    %v185 = vunpack.c.l.b16 %v163
    %v186 = vunpack.c.h.b16 %v163
    %v187 = vunpack.c.l.b16 %v164
    %v188 = vunpack.c.h.b16 %v164
    %v189 = vpack.c.b16 %v175, %v173
    %v190 = vpack.c.b16 %v176, %v174
    %v191 = vpack.c.b16 %v179, %v177
    %v192 = vpack.c.b16 %v180, %v178
    %v193 = vpack.c.b16 %v183, %v181
    %v194 = vpack.c.b16 %v184, %v182
    %v195 = vpack.c.b16 %v187, %v185
    %v196 = vpack.c.b16 %v188, %v186
    %205 = vmatprep.subr.bf16.mxu0 %v190
    %206 = vmatpush1.bf16.msra.mxu0 %v189
    %207 = vmatprep.subr.bf16.mxu0 %v192
    %208 = vmatpush1.bf16.msra.mxu0 %v191
    %209 = vmatprep.subr.bf16.mxu0 %v194
    %210 = vmatpush1.bf16.msra.mxu0 %v193
    %211 = vmatprep.subr.bf16.mxu0 %v196
    %212 = vmatpush1.bf16.msra.mxu0 %v195
    %213 = vmatprep.subr.bf16.mxu0 0
    %214 = vmatpush1.bf16.msra.mxu0 0
    %215 = vmatprep.subr.bf16.mxu0 0
    %216 = vmatpush1.bf16.msra.mxu0 0
    %217 = vmatprep.subr.bf16.mxu0 0
    %218 = vmatpush1.bf16.msra.mxu0 0
    %219 = vmatprep.subr.bf16.mxu0 0
    %220 = vmatpush1.bf16.msra.mxu0 0
    %221 = vmatprep.subr.bf16.mxu0 0
    %222 = vmatpush1.bf16.msra.mxu0 0
    %223 = vmatprep.subr.bf16.mxu0 0
    %224 = vmatpush1.bf16.msra.mxu0 0
    %225 = vmatprep.subr.bf16.mxu0 0
    %226 = vmatpush1.bf16.msra.mxu0 0
    %227 = vmatprep.subr.bf16.mxu0 0
    %228 = vmatpush1.bf16.msra.mxu0 0
    %229 = vmatprep.subr.bf16.mxu0 0
    %230 = vmatpush1.bf16.msra.mxu0 0
    %231 = vmatprep.subr.bf16.mxu0 0
    %232 = vmatpush1.bf16.msra.mxu0 0
    %233 = vmatprep.subr.bf16.mxu0 0
    %234 = vmatpush1.bf16.msra.mxu0 0
    %235 = vmatprep.subr.bf16.mxu0 0
    %236 = vmatpush1.bf16.msra.mxu0 0
    %237 = vmatprep.mubr.bf16.mxu0 0
    %238 = vmatmul.mubr.bf16.gmra.mrb[0].mxu0 %v108
    %v239 = vpop.f32.mrb[0].mxu0
    %v240 = vadd.f32 0.0, %v239
    %v241 = vpop.f32.mrb[0].mxu0
    %v242 = vadd.f32 0.0, %v241
    %v243 = vpop.f32.mrb[0].mxu0
    %v244 = vadd.f32 0.0, %v243
    %v245 = vpop.f32.mrb[0].mxu0
    %v246 = vadd.f32 0.0, %v245
    %247 = vdwg.mxu0
    %v248 = vmul.f32 %v240, %v57
    %v249 = vmul.f32 %v242, %v57
    %v250 = vmul.f32 %v244, %v58
    %v251 = vmul.f32 %v246, %v58
    %v252 = vxor.u32 %v153, 2147483648
    %v253 = vxor.u32 %v154, 2147483648
    %v254 = vxor.u32 %v155, 2147483648
    %v255 = vxor.u32 %v156, 2147483648
    %v256 = vmul.f32 %v252, 1.442695
    %v257 = vpow.pop %v256
    %v258 = vmul.f32 %v253, 1.442695
    %v259 = vpow.pop %v258
    %v260 = vmul.f32 %v254, 1.442695
    %v261 = vpow.pop %v260
    %v262 = vmul.f32 %v255, 1.442695
    %v263 = vpow.pop %v262
    %v264 = vadd.f32 %v257, 1.0
    %v265 = vadd.f32 %v259, 1.0
    %v266 = vadd.f32 %v261, 1.0
    %v267 = vadd.f32 %v263, 1.0
    %v268 = vrcp.pop %v264
    %v269 = vmul.f32 1.0, %v268
    %v270 = vrcp.pop %v265
    %v271 = vmul.f32 1.0, %v270
    %v272 = vrcp.pop %v266
    %v273 = vmul.f32 1.0, %v272
    %v274 = vrcp.pop %v267
    %v275 = vmul.f32 1.0, %v274
    %v276 = vmul.f32 %v153, %v269
    %v277 = vmul.f32 %v154, %v271
    %v278 = vmul.f32 %v155, %v273
    %v279 = vmul.f32 %v156, %v275
    %v280 = vmul.f32 %v276, %v248
    %v281 = vmul.f32 %v277, %v249
    %v282 = vmul.f32 %v278, %v250
    %v283 = vmul.f32 %v279, %v251
    %v284 = vand.u32 2147483647, %v280
    %v285 = vand.u32 2147483647, %v281
    %v286 = vand.u32 2147483647, %v282
    %v287 = vand.u32 2147483647, %v283
    %v288 = vmax.f32 %v284, %v285
    %289 = vmax.xlane.f32.xlu0 %v288
    %v290 = vpop.xlane.xlu0 %289
    %v291 = vmax.f32 %v286, %v287
    %292 = vmax.xlane.f32.xlu0 %v291
    %v293 = vpop.xlane.xlu0 %292
    %v294 = vmax.f32 %v290, 1e-05
    %v295 = vmax.f32 %v293, 1e-05
    %v296 = vrcp.pop %v294
    %v297 = vmul.f32 127.0, %v296
    %v298 = vrcp.pop %v295
    %v299 = vmul.f32 127.0, %v298
    %v300 = vmul.f32 %v280, %v297
    %v301 = vmul.f32 %v281, %v297
    %v302 = vmul.f32 %v282, %v299
    %v303 = vmul.f32 %v283, %v299
    %v304 = vround.ne.pseudo %v300
    %v305 = vround.ne.pseudo %v301
    %v306 = vround.ne.pseudo %v302
    %v307 = vround.ne.pseudo %v303
    %v308 = vmax.f32 %v304, -128.0
    %v309 = vmax.f32 %v305, -128.0
    %v310 = vmax.f32 %v306, -128.0
    %v311 = vmax.f32 %v307, -128.0
    %v312 = vmin.f32 %v308, 127.0
    %v313 = vmin.f32 %v309, 127.0
    %v314 = vmin.f32 %v310, 127.0
    %v315 = vmin.f32 %v311, 127.0
    %v316 = vpack.c.bf16 %v314, %v312
    %v317 = vpack.c.bf16 %v315, %v313
    %v318 = vmul.f32 %v294, 0.007874016
    %v319 = vmul.f32 %v295, 0.007874016
    %s320 = sld [smem:[#allocation3]]
    %v321 = vstv %s320
    %v322 = vmul.f32 %v318, %v321
    %v323 = vmul.f32 %v319, %v321
    %v324 = vld [vmem:[%s3] sm:$0xf]
    %v325 = vld [vmem:[%s3 + $0x4] sm:$0xf]
    %v326 = vld [vmem:[%s3 + $0x8] sm:$0xf]
    %v327 = vld [vmem:[%s3 + $0xc] sm:$0xf]
    %v328 = vld [vmem:[%s3 + $0x10] sm:$0xf]
    %v329 = vld [vmem:[%s3 + $0x14] sm:$0xf]
    %v330 = vld [vmem:[%s3 + $0x18] sm:$0xf]
    %v331 = vld [vmem:[%s3 + $0x1c] sm:$0xf]
    %v332 = vld [vmem:[%s3 + $0x20] sm:$0xf]
    %v333 = vld [vmem:[%s3 + $0x24] sm:$0xf]
    %v334 = vld [vmem:[%s3 + $0x28] sm:$0xf]
    %v335 = vld [vmem:[%s3 + $0x2c] sm:$0xf]
    %v336 = vld [vmem:[%s3 + $0x30] sm:$0xf]
    %v337 = vld [vmem:[%s3 + $0x34] sm:$0xf]
    %v338 = vld [vmem:[%s3 + $0x38] sm:$0xf]
    %v339 = vld [vmem:[%s3 + $0x3c] sm:$0xf]
    %v340 = vld [vmem:[%s3 + $0x40] sm:$0xf]
    %v341 = vld [vmem:[%s3 + $0x44] sm:$0xf]
    %v342 = vld [vmem:[%s3 + $0x48] sm:$0xf]
    %v343 = vld [vmem:[%s3 + $0x4c] sm:$0xf]
    %v344 = vld [vmem:[%s3 + $0x50] sm:$0xf]
    %v345 = vld [vmem:[%s3 + $0x54] sm:$0xf]
    %v346 = vld [vmem:[%s3 + $0x58] sm:$0xf]
    %v347 = vld [vmem:[%s3 + $0x5c] sm:$0xf]
    %v348 = vld [vmem:[%s3 + $0x60] sm:$0xf]
    %v349 = vld [vmem:[%s3 + $0x64] sm:$0xf]
    %v350 = vld [vmem:[%s3 + $0x68] sm:$0xf]
    %v351 = vld [vmem:[%s3 + $0x6c] sm:$0xf]
    %v352 = vld [vmem:[%s3 + $0x70] sm:$0xf]
    %v353 = vld [vmem:[%s3 + $0x74] sm:$0xf]
    %v354 = vld [vmem:[%s3 + $0x78] sm:$0xf]
    %v355 = vld [vmem:[%s3 + $0x7c] sm:$0xf]
    %v388 = vunpack.c.l.b16 %v324
    %v389 = vunpack.c.l.b16 %v325
    %v390 = vunpack.c.l.b16 %v326
    %v391 = vunpack.c.l.b16 %v327
    %v392 = vunpack.c.l.b16 %v328
    %v393 = vunpack.c.l.b16 %v329
    %v394 = vunpack.c.l.b16 %v330
    %v395 = vunpack.c.l.b16 %v331
    %v396 = vunpack.c.l.b16 %v332
    %v397 = vunpack.c.l.b16 %v333
    %v398 = vunpack.c.l.b16 %v334
    %v399 = vunpack.c.l.b16 %v335
    %v400 = vunpack.c.l.b16 %v336
    %v401 = vunpack.c.l.b16 %v337
    %v402 = vunpack.c.l.b16 %v338
    %v403 = vunpack.c.l.b16 %v339
    %v404 = vunpack.c.l.b16 %v340
    %v405 = vunpack.c.l.b16 %v341
    %v406 = vunpack.c.l.b16 %v342
    %v407 = vunpack.c.l.b16 %v343
    %v408 = vunpack.c.l.b16 %v344
    %v409 = vunpack.c.l.b16 %v345
    %v410 = vunpack.c.l.b16 %v346
    %v411 = vunpack.c.l.b16 %v347
    %v412 = vunpack.c.l.b16 %v348
    %v413 = vunpack.c.l.b16 %v349
    %v414 = vunpack.c.l.b16 %v350
    %v415 = vunpack.c.l.b16 %v351
    %v416 = vunpack.c.l.b16 %v352
    %v417 = vunpack.c.l.b16 %v353
    %v418 = vunpack.c.l.b16 %v354
    %v419 = vunpack.c.l.b16 %v355
    %v420 = vpack.c.b16 %v389, %v388
    %v421 = vpack.c.b16 %v391, %v390
    %v422 = vpack.c.b16 %v393, %v392
    %v423 = vpack.c.b16 %v395, %v394
    %v424 = vpack.c.b16 %v397, %v396
    %v425 = vpack.c.b16 %v399, %v398
    %v426 = vpack.c.b16 %v401, %v400
    %v427 = vpack.c.b16 %v403, %v402
    %v428 = vpack.c.b16 %v405, %v404
    %v429 = vpack.c.b16 %v407, %v406
    %v430 = vpack.c.b16 %v409, %v408
    %v431 = vpack.c.b16 %v411, %v410
    %v432 = vpack.c.b16 %v413, %v412
    %v433 = vpack.c.b16 %v415, %v414
    %v434 = vpack.c.b16 %v417, %v416
    %v435 = vpack.c.b16 %v419, %v418
    %452 = vmatprep.subr.bf16.mxu0 0
    %453 = vmatpush1.bf16.msra.mxu0 %v420
    %454 = vmatprep.subr.bf16.mxu0 0
    %455 = vmatpush1.bf16.msra.mxu0 %v421
    %456 = vmatprep.subr.bf16.mxu0 0
    %457 = vmatpush1.bf16.msra.mxu0 %v422
    %458 = vmatprep.subr.bf16.mxu0 0
    %459 = vmatpush1.bf16.msra.mxu0 %v423
    %460 = vmatprep.subr.bf16.mxu0 0
    %461 = vmatpush1.bf16.msra.mxu0 %v424
    %462 = vmatprep.subr.bf16.mxu0 0
    %463 = vmatpush1.bf16.msra.mxu0 %v425
    %464 = vmatprep.subr.bf16.mxu0 0
    %465 = vmatpush1.bf16.msra.mxu0 %v426
    %466 = vmatprep.subr.bf16.mxu0 0
    %467 = vmatpush1.bf16.msra.mxu0 %v427
    %468 = vmatprep.subr.bf16.mxu0 0
    %469 = vmatpush1.bf16.msra.mxu0 %v428
    %470 = vmatprep.subr.bf16.mxu0 0
    %471 = vmatpush1.bf16.msra.mxu0 %v429
    %472 = vmatprep.subr.bf16.mxu0 0
    %473 = vmatpush1.bf16.msra.mxu0 %v430
    %474 = vmatprep.subr.bf16.mxu0 0
    %475 = vmatpush1.bf16.msra.mxu0 %v431
    %476 = vmatprep.subr.bf16.mxu0 0
    %477 = vmatpush1.bf16.msra.mxu0 %v432
    %478 = vmatprep.subr.bf16.mxu0 0
    %479 = vmatpush1.bf16.msra.mxu0 %v433
    %480 = vmatprep.subr.bf16.mxu0 0
    %481 = vmatpush1.bf16.msra.mxu0 %v434
    %482 = vmatprep.subr.bf16.mxu0 0
    %483 = vmatpush1.bf16.msra.mxu0 %v435
    %484 = vmatprep.mubr.bf16.mxu0 %v317
    %485 = vmatmul.mubr.bf16.gmra.mrb[0].mxu0 %v316
    %v486 = vpop.f32.mrb[0].mxu0
    %v487 = vadd.f32 0.0, %v486
    %v488 = vpop.f32.mrb[0].mxu0
    %v489 = vpop.f32.mrb[0].mxu0
    %v490 = vadd.f32 0.0, %v489
    %v491 = vpop.f32.mrb[0].mxu0
    %492 = vdwg.mxu0
    %v493 = vmul.f32 %v487, %v322
    %v494 = vmul.f32 %v490, %v323
    %495 = vst.msk [vmem:[#allocation4] sm:$0xff] %vm31, %v493
    %496 = vst.msk [vmem:[#allocation4 + $0x8] sm:$0xff] %vm31, %v494
    // Predicated region
    $region26: #{tpu_custom_call.1} parent=1 // pred_check
      _
    $region27: #{tpu_custom_call.1} parent=1 // pred_check_branch
      %498 = sbr.rel (0) target = $region29
    $region28: #{tpu_custom_call.1} parent=1 // pred_region
      %s500 = ssub.s32 256, 256
      %501 = vsyncadd [#allocation5], %s500
      %s502 = sshll.u32 [#allocation4], 4
      %s503 = int_to_ptr.vmem [resolvable:$true] %s502
      %508 = dma.vmem_to_hbm [thread:$0]  %s503, 256, %s6, [#allocation5], 128, 128, 8
    $region29: #{tpu_custom_call.1} parent=1 // pred_fallthru
      _
    // Predicated region
    $region30: #{tpu_custom_call.1} parent=1 // pred_check
      _
    $region31: #{tpu_custom_call.1} parent=1 // pred_check_branch
      %510 = sbr.rel (0) target = $region33
    $region32: #{tpu_custom_call.1} parent=1 // pred_region
      %511 = dma.done [#allocation5], 256
    $region33: #{tpu_custom_call.1} parent=1 // pred_fallthru
      _
    %512 = vsyncpa [#allocation5], 1

</llo_original>
